<compile_context>
chip_gen: v6e
topology: v6e:2x2x1
jax: 0.10.0
libtpu: 0.0.40
codegen_flags: <defaults>
</compile_context>

<pallas_src>
import functools

import jax
import jax.numpy as jnp
from jax.experimental import pallas as pl
from jax.experimental.pallas import tpu as pltpu

LANE = 128
SUB = 8

EW_BLOCK_BYTES = 4 << 20   # elementwise: (in + out) double-buffered -> ~16 MiB VMEM
MM_BLOCK_BYTES = 8 << 20   # min/max: only the input is pipelined   -> ~16 MiB VMEM
VMEM_LIMIT_BYTES = 40 << 20


# ----------------------------- Pallas kernels ------------------------------

def _relu_kernel(x_ref, o_ref):
    x = x_ref[...]
    o_ref[...] = jnp.maximum(x, jnp.zeros_like(x))


def _fakequant_relu_kernel(params_ref, x_ref, o_ref):
    # params_ref (SMEM f32[3]): [scale, inv_scale, qmax - zero_point]
    scale = params_ref[0]
    inv_scale = params_ref[1]
    hi = params_ref[2]
    x = x_ref[...].astype(jnp.float32)
    # Folded quantize->clamp->round->dequantize->relu (zero_point is an integer,
    # scale >= 0, so this is algebraically identical to the unfused form).
    q = jnp.round(jnp.clip(x * inv_scale, 0.0, hi))
    o_ref[...] = (scale * q).astype(o_ref.dtype)


def _minmax_kernel(x_ref, min_ref, max_ref, vmin_sc, vmax_sc, *,
                   n_valid, block_rows, needs_mask):
    i = pl.program_id(0)
    last = pl.num_programs(0) - 1

    @pl.when(i == 0)
    def _():
        vmin_sc[...] = jnp.full_like(vmin_sc, jnp.inf)
        vmax_sc[...] = jnp.full_like(vmax_sc, -jnp.inf)

    x = x_ref[...].astype(jnp.float32)

    def accumulate(x_for_min, x_for_max):
        # (block_rows, LANE) -> (block_rows//8, 8, LANE); the axis-0 reduce is an
        # elementwise min/max across vregs (pure VPU, no per-step XLU work).
        xm = x_for_min.reshape(-1, SUB, LANE)
        xM = x_for_max.reshape(-1, SUB, LANE)
        vmin_sc[...] = jnp.minimum(vmin_sc[...], jnp.min(xm, axis=0))
        vmax_sc[...] = jnp.maximum(vmax_sc[...], jnp.max(xM, axis=0))

    if needs_mask:
        # Only the last block can hold padding / out-of-bounds elements; every
        # other step stays on the cheap unmasked path.
        @pl.when(i != last)
        def _():
            accumulate(x, x)

        @pl.when(i == last)
        def _():
            row = jax.lax.broadcasted_iota(jnp.int32, x.shape, 0) + i * block_rows
            lane = jax.lax.broadcasted_iota(jnp.int32, x.shape, 1)
            valid = row * LANE + lane < n_valid
            accumulate(jnp.where(valid, x, jnp.inf),
                       jnp.where(valid, x, -jnp.inf))
    else:
        accumulate(x, x)

    # Single cross-lane reduce + narrow store, only on the last grid step.
    @pl.when(i == last)
    def _():
        min_ref[...] = jnp.min(vmin_sc[...], keepdims=True)
        max_ref[...] = jnp.max(vmax_sc[...], keepdims=True)


# ------------------------------- wrappers -----------------------------------

def _as_rows(x):
    """Flatten to a lane-dense (rows, 128) view. Zero-copy in the aligned case."""
    flat = x.reshape(-1)
    n = flat.shape[0]
    rows = max(pl.cdiv(n, LANE), SUB)
    total = rows * LANE
    if total != n:
        # TODO(synk): for lane-unaligned giants, handle the <128-element tail outside
        # the kernel instead of materializing a padded copy; aligned shapes skip this.
        flat = jnp.pad(flat, (0, total - n))
    return flat.reshape(rows, LANE), n


def _ew_block_rows(rows, dtype):
    itemsize = jnp.dtype(dtype).itemsize
    target = max(SUB, (EW_BLOCK_BYTES // (LANE * itemsize)) // SUB * SUB)
    # Full-extent block is legal regardless of sublane multiples.
    return rows if rows <= target else target


def _mm_block_rows(rows, dtype):
    itemsize = jnp.dtype(dtype).itemsize
    target = max(SUB, (MM_BLOCK_BYTES // (LANE * itemsize)) // SUB * SUB)
    # Reduction kernel reshapes to (-1, 8, 128): keep block_rows a multiple of 8.
    return max(SUB, (min(rows, target) // SUB) * SUB)


def pallas_relu(x):
    x2d, n = _as_rows(x)
    rows = x2d.shape[0]
    block_rows = _ew_block_rows(rows, x2d.dtype)
    grid = pl.cdiv(rows, block_rows)
    nbytes = x2d.size * x2d.dtype.itemsize
    out = pl.pallas_call(
        _relu_kernel,
        out_shape=jax.ShapeDtypeStruct((rows, LANE), x.dtype),
        grid=(grid,),
        in_specs=[pl.BlockSpec((block_rows, LANE), lambda i: (i, 0))],
        out_specs=pl.BlockSpec((block_rows, LANE), lambda i: (i, 0)),
        compiler_params=pltpu.CompilerParams(
            dimension_semantics=("parallel",),
            vmem_limit_bytes=VMEM_LIMIT_BYTES),
        cost_estimate=pl.CostEstimate(
            flops=x2d.size, transcendentals=0, bytes_accessed=2 * nbytes),
    )(x2d)
    if rows * LANE != n:
        return out.reshape(-1)[:n].reshape(x.shape)
    return out.reshape(x.shape)


def pallas_minmax(x):
    x2d, n = _as_rows(x)
    rows = x2d.shape[0]
    block_rows = _mm_block_rows(rows, x2d.dtype)
    grid = pl.cdiv(rows, block_rows)
    needs_mask = (rows * LANE != n) or (rows % block_rows != 0)
    nbytes = x2d.size * x2d.dtype.itemsize
    kernel = functools.partial(
        _minmax_kernel, n_valid=n, block_rows=block_rows, needs_mask=needs_mask)
    mn, mx = pl.pallas_call(
        kernel,
        out_shape=(jax.ShapeDtypeStruct((1, 1), jnp.float32),
                   jax.ShapeDtypeStruct((1, 1), jnp.float32)),
        grid=(grid,),
        in_specs=[pl.BlockSpec((block_rows, LANE), lambda i: (i, 0))],
        out_specs=(pl.BlockSpec((1, 1), lambda i: (0, 0)),
                   pl.BlockSpec((1, 1), lambda i: (0, 0))),
        scratch_shapes=[pltpu.VMEM((SUB, LANE), jnp.float32),
                        pltpu.VMEM((SUB, LANE), jnp.float32)],
        compiler_params=pltpu.CompilerParams(
            dimension_semantics=("arbitrary",),
            vmem_limit_bytes=VMEM_LIMIT_BYTES),
        cost_estimate=pl.CostEstimate(
            flops=2 * x2d.size, transcendentals=0, bytes_accessed=nbytes),
    )(x2d)
    return mn[0, 0], mx[0, 0]


def pallas_fakequant_relu(x, scale, zero_point, num_bits=8):
    x2d, n = _as_rows(x)
    rows = x2d.shape[0]
    block_rows = _ew_block_rows(rows, x2d.dtype)
    grid = pl.cdiv(rows, block_rows)
    qmax = 2.0 ** num_bits - 1.0
    scale = jnp.asarray(scale, jnp.float32)
    zero_point = jnp.asarray(zero_point, jnp.float32)
    # Exact reciprocal computed once; scale==0 (all-zero input) degenerates to
    # q == 0 everywhere -> output 0, matching the intended behaviour.
    safe_scale = jnp.where(scale > 0, scale, jnp.float32(1.0))
    inv_scale = jnp.where(scale > 0, 1.0 / safe_scale, jnp.float32(0.0))
    params = jnp.stack([scale, inv_scale, jnp.float32(qmax) - zero_point])
    nbytes = x2d.size * x2d.dtype.itemsize
    out = pl.pallas_call(
        _fakequant_relu_kernel,
        out_shape=jax.ShapeDtypeStruct((rows, LANE), x.dtype),
        grid=(grid,),
        in_specs=[pl.BlockSpec(memory_space=pltpu.MemorySpace.SMEM),
                  pl.BlockSpec((block_rows, LANE), lambda i: (i, 0))],
        out_specs=pl.BlockSpec((block_rows, LANE), lambda i: (i, 0)),
        compiler_params=pltpu.CompilerParams(
            dimension_semantics=("parallel",),
            vmem_limit_bytes=VMEM_LIMIT_BYTES),
        cost_estimate=pl.CostEstimate(
            flops=5 * x2d.size, transcendentals=0, bytes_accessed=2 * nbytes),
    )(params, x2d)
    if rows * LANE != n:
        return out.reshape(-1)[:n].reshape(x.shape)
    return out.reshape(x.shape)


# ------------------------------ module port ---------------------------------

def _calc_scale_zero_point(min_val, max_val, num_bits=8):
    qmin = 0.0
    qmax = 2.0 ** num_bits - 1.0
    scale = (max_val - min_val) / (qmax - qmin)
    # Guard the degenerate max == min (== 0 after the clamps) case.
    safe_scale = jnp.where(scale > 0, scale, jnp.float32(1.0))
    zero_point = qmax - max_val / safe_scale
    zero_point = jnp.round(jnp.clip(zero_point, qmin, qmax))
    return scale, zero_point


class QReLUPallas:
    """Port of QReLU. Default (qi=False) forward == ReLU, matching the PyTorch module."""

    def __init__(self, qi=False, num_bits=None):
        self.has_qi = qi
        self.num_bits = 8 if num_bits is None else num_bits
        # NOTE: eager Python-side statistics (mirrors PyTorch buffer updates);
        # not intended to be traced under jit/scan.
        self.min = None
        self.max = None
        self.scale = None
        self.zero_point = None

    def _update_statistic(self, x):
        mn, mx = pallas_minmax(x)
        self.max = mx if self.max is None else jnp.maximum(self.max, mx)
        self.max = jnp.maximum(self.max, 0.0)          # max.clamp_(min=0)
        self.min = mn if self.min is None else jnp.minimum(self.min, mn)
        self.min = jnp.minimum(self.min, 0.0)          # min.clamp_(max=0)
        self.scale, self.zero_point = _calc_scale_zero_point(
            self.min, self.max, self.num_bits)

    def __call__(self, x):
        if self.has_qi:
            self._update_statistic(x)
            # FakeQuantize.apply(x, qi) followed by relu, fused in one kernel.
            return pallas_fakequant_relu(x, self.scale, self.zero_point, self.num_bits)
        return pallas_relu(x)

    def quantize_inference(self, x):
        # x[x < zero_point] = zero_point  ==  max(x, zero_point)
        # TODO(synk): trivially elementwise; kept in plain JAX rather than adding
        # another Pallas kernel for a single max.
        return jnp.maximum(x, self.zero_point)


# --------------------------------- main --------------------------------------

if __name__ == "__main__":
    key = jax.random.PRNGKey(0)
    k0, k1 = jax.random.split(key)
    x = jax.random.normal(k0, (2, 4, 16, 16), dtype=jnp.float32)

    # ---- Default module (qi=False): forward == relu ----
    m = QReLUPallas(qi=False, num_bits=None)
    y = jax.block_until_ready(m(x))
    assert jnp.allclose(y, jnp.maximum(x, 0.0), atol=1e-6), "relu path mismatch"

    # ---- qi=True path: stats + fake-quantize + relu ----
    m2 = QReLUPallas(qi=True, num_bits=8)
    y2 = jax.block_until_ready(m2(x))

    mx = jnp.maximum(jnp.max(x), 0.0)
    mn = jnp.minimum(jnp.min(x), 0.0)
    scale = (mx - mn) / 255.0
    zp = jnp.round(jnp.clip(255.0 - mx / scale, 0.0, 255.0))
    # Exact reference for the folded kernel math.
    ref_folded = scale * jnp.round(jnp.clip(x * (1.0 / scale), 0.0, 255.0 - zp))
    assert jnp.allclose(y2, ref_folded, atol=1e-6), "fake-quant relu path mismatch"
    # PyTorch-style (unfused) reference: must agree to within one quant step.
    q = jnp.round(jnp.clip(zp + x / scale, 0.0, 255.0))
    ref_torch = jnp.maximum(scale * (q - zp), 0.0)
    max_err = float(jnp.max(jnp.abs(y2 - ref_torch)))
    assert max_err <= float(scale) + 1e-5, "fake-quant deviates > 1 quant step"

    # ---- lane-unaligned / ragged tail: exercise padding + in-kernel mask ----
    xr = jax.random.normal(k1, (3, 5, 7), dtype=jnp.float32)
    yr = jax.block_until_ready(pallas_relu(xr))
    assert jnp.allclose(yr, jnp.maximum(xr, 0.0), atol=1e-6), "ragged relu mismatch"
    xp = xr + 5.0  # strictly positive -> zero padding would corrupt min if unmasked
    mn_r, mx_r = pallas_minmax(xp)
    mn_r, mx_r = jax.block_until_ready((mn_r, mx_r))
    assert jnp.allclose(mn_r, jnp.min(xp), atol=1e-6), "ragged min mismatch"
    assert jnp.allclose(mx_r, jnp.max(xp), atol=1e-6), "ragged max mismatch"

    print("KERNEL_OK")
</pallas_src>

<mosaic_0001>
module attributes {stable_mosaic.version = 11 : i64} {
  func.func @_relu_kernel(%arg0: i32, %arg1: memref<16x128xf32, #tpu.memory_space<vmem>>, %arg2: memref<16x128xf32, #tpu.memory_space<vmem>>) attributes {dimension_semantics = [#tpu.dimension_semantics<parallel>], iteration_bounds = array<i64: 1>, scalar_prefetch = 0 : i64, scratch_operands = 0 : i64, tpu.core_type = #tpu.core_type<tc>, window_params = [{transform_indices = @transform_0, window_bounds = array<i64: 16, 128>}, {transform_indices = @transform_1, window_bounds = array<i64: 16, 128>}]} {
    %c0 = arith.constant 0 : index
    %c0_0 = arith.constant 0 : index
    %0 = vector.load %arg1[%c0, %c0_0] : memref<16x128xf32, #tpu.memory_space<vmem>>, vector<16x128xf32>
    %cst = arith.constant 0.000000e+00 : f32
    %1 = vector.broadcast %cst : f32 to vector<16x128xf32>
    %2 = arith.maximumf %0, %1 : vector<16x128xf32>
    %c0_1 = arith.constant 0 : index
    %c0_2 = arith.constant 0 : index
    %3 = vector.load %arg2[%c0_1, %c0_2] : memref<16x128xf32, #tpu.memory_space<vmem>>, vector<16x128xf32>
    tpu.vector_store %arg2[%c0_1, %c0_2], %2 {strides = array<i32>} : memref<16x128xf32, #tpu.memory_space<vmem>>, vector<16x128xf32>,
    return
  }
  func.func @transform_0(%arg0: i32) -> (i32, i32) {
    %c0_i32 = arith.constant 0 : i32
    %c0_i32_0 = arith.constant 0 : i32
    return %arg0, %c0_i32 : i32, i32
  }
  func.func @transform_1(%arg0: i32) -> (i32, i32) {
    %c0_i32 = arith.constant 0 : i32
    %c0_i32_0 = arith.constant 0 : i32
    return %arg0, %c0_i32 : i32, i32
  }
}

</mosaic_0001>

<llo_original>
// kernel: tpu_custom_call.1
$region0: #{tpu_custom_call.1}
  #allocation0 [shape = 'u32[]', space=smem, size = 0x4, offset = 0x4, fixed_abs, tag = 'smem constant byte address 0x4 - core index']
  #allocation1 [shape = 'u32[144,128]{1,0:T(1,128)}', space=vmem, size = 0x12000, scoped, tag = 'internal scratch']
  %s0 = inlined_call_operand.hbm [shape: f32[16,128], index: 0, kind: input, shape index: {}]
  %s1 = inlined_call_operand.hbm [shape: f32[16,128], index: 1, kind: output, shape index: {}]
  %s2 = sld [smem:[#allocation0]]
  $region18: #{tpu_custom_call.1} parent=0
    _
  %s4 = ssub.s32 1, %s2
  %s5 = scalar_select 0, %s4, %s2
  $region1: #{tpu_custom_call.1} parent=0
    #allocation2 [shape = 'u8[8192]{0}', space=vmem, size = 0x2000, scoped, tag = 'input window, operand 0, single buffered']
    #allocation3 [shape = 's32[1]{0}', space=sflag, size = 0x4, scoped, tag = 'scoped memory for tpu_custom_call.1']
    #allocation4 [shape = 's32[1]{0}', space=sflag, size = 0x4, scoped, tag = 'scoped memory for tpu_custom_call.1']
    #allocation5 [shape = 'u8[8192]{0}', space=vmem, size = 0x2000, scoped, tag = 'output window, operand 0, single buffered']
    %6 = vsyncpa [#allocation3], 0
    %7 = vsyncpa [#allocation4], 0
    // Predicated region
    $region2: #{tpu_custom_call.1} parent=1 // pred_check
      _
    $region3: #{tpu_custom_call.1} parent=1 // pred_check_branch
      %9 = sbr.rel (0) target = $region5
    $region4: #{tpu_custom_call.1} parent=1 // pred_region
      %s11 = ssub.s32 256, 256
      %12 = vsyncadd [#allocation3], %s11
      %s13 = sshll.u32 [#allocation2], 4
      %s14 = int_to_ptr.vmem [resolvable:$true] %s13
      %19 = dma.hbm_to_vmem [thread:$0]  %s0, 256, %s14, [#allocation3], 128, 128, 8
    $region5: #{tpu_custom_call.1} parent=1 // pred_fallthru
      _
    // Predicated region
    $region6: #{tpu_custom_call.1} parent=1 // pred_check
      _
    $region7: #{tpu_custom_call.1} parent=1 // pred_check_branch
      %21 = sbr.rel (0) target = $region9
    $region8: #{tpu_custom_call.1} parent=1 // pred_region
      %22 = dma.done [#allocation3], 256
    $region9: #{tpu_custom_call.1} parent=1 // pred_fallthru
      _
    %v23 = vld [vmem:[#allocation2] sm:$0xff]
    %v24 = vld [vmem:[#allocation2 + $0x8] sm:$0xff]
    %v25 = vmax.f32 %v23, 0.0
    %v26 = vmax.f32 %v24, 0.0
    %27 = vst [vmem:[#allocation5] sm:$0xff] %v25
    %28 = vst [vmem:[#allocation5 + $0x8] sm:$0xff] %v26
    // Predicated region
    $region10: #{tpu_custom_call.1} parent=1 // pred_check
      _
    $region11: #{tpu_custom_call.1} parent=1 // pred_check_branch
      %30 = sbr.rel (0) target = $region13
    $region12: #{tpu_custom_call.1} parent=1 // pred_region
      %s32 = ssub.s32 256, 256
      %33 = vsyncadd [#allocation4], %s32
      %s34 = sshll.u32 [#allocation5], 4
      %s35 = int_to_ptr.vmem [resolvable:$true] %s34
      %40 = dma.vmem_to_hbm [thread:$0]  %s35, 256, %s1, [#allocation4], 128, 128, 8
    $region13: #{tpu_custom_call.1} parent=1 // pred_fallthru
      _
    // Predicated region
    $region14: #{tpu_custom_call.1} parent=1 // pred_check
      _
    $region15: #{tpu_custom_call.1} parent=1 // pred_check_branch
      %42 = sbr.rel (0) target = $region17
    $region16: #{tpu_custom_call.1} parent=1 // pred_region
      %43 = dma.done [#allocation4], 256
    $region17: #{tpu_custom_call.1} parent=1 // pred_fallthru
      _
    %44 = vsyncpa [#allocation3], 1
    %45 = vsyncpa [#allocation4], 1

</llo_original>
